<compile_context>
chip_gen: v7x
topology: tpu7x:2x2x1
jax: 0.10.0
libtpu: 0.0.40
codegen_flags: <defaults>
</compile_context>

<pallas_src>
import functools

import jax
import jax.numpy as jnp
from jax.experimental import pallas as pl
from jax.experimental.pallas import tpu as pltpu


_MIB = 1024 * 1024
# Conservative whole-sample residency budget so the same block choice works on
# v5e/v6e (128 MiB physical VMEM) and v7x (64 MiB physical VMEM).
_WHOLE_SAMPLE_VMEM_BUDGET = 48 * _MIB
_TILE_VMEM_BUDGET = 40 * _MIB
# Lane-dense tile widths (multiples of 128 -> unmasked vector stores).
_TILE_CANDIDATES = (4096, 2048, 1024, 512, 256, 128)


def _whole_sample_vmem_estimate(C, T, itemsize):
    blk = C * T * itemsize
    f32_tmp = C * T * 4
    params = 4 * C * 4
    # double-buffered in + out blocks, f32 temporaries for x*x / epilogue, slack
    return 2 * blk + 2 * blk + 3 * f32_tmp + params + 2 * _MIB


def _tiled_vmem_estimate(C, tile_t, itemsize):
    blk = C * tile_t * itemsize
    f32_tmp = C * tile_t * 4
    params = 4 * C * 4
    return 2 * blk + 2 * blk + 2 * f32_tmp + params + 2 * _MIB


# -----------------------------------------------------------------------------
# Whole-sample fused kernel: stats + normalize in one pass over the sample.
# -----------------------------------------------------------------------------
def _gln_fused_kernel(x_ref, gamma_ref, beta_ref, o_ref, *, eps, inv_n):
    # x_ref: (C, T) for the current batch element (batch dim squeezed away).
    x = x_ref[...]                                   # native dtype, no full upcast

    # Single-pass global statistics, accumulated in f32.
    # (For bf16 inputs x*x is formed in bf16; the f32 accumulation keeps the
    #  reduction stable — acceptable tradeoff vs. materializing an f32 copy.)
    s1 = jnp.sum(x, dtype=jnp.float32)
    s2 = jnp.sum(x * x, dtype=jnp.float32)

    mean = s1 * inv_n
    var = jnp.maximum(s2 * inv_n - mean * mean, 0.0)  # biased variance, clamped
    inv_std = jax.lax.rsqrt(var + eps)

    # Fold affine into per-channel scale/shift on the tiny (C, 1) shape.
    scale = gamma_ref[...].astype(jnp.float32) * inv_std      # (C, 1)
    shift = beta_ref[...].astype(jnp.float32) - mean * scale  # (C, 1)

    # 2 VPU ops per element.
    o_ref[...] = (x * scale + shift).astype(o_ref.dtype)


def _gln_whole_sample(x, gamma, beta, eps):
    N, C, T = x.shape
    itemsize = jnp.dtype(x.dtype).itemsize
    est = _whole_sample_vmem_estimate(C, T, itemsize)
    # NOTE: the >64 MiB range is only reachable via the rare "no legal T tile"
    # fallback; it will still compile on v5e/v6e (128 MiB physical VMEM).
    vmem_limit = int(min(max(est, 16 * _MIB), 96 * _MIB))

    kernel = functools.partial(
        _gln_fused_kernel, eps=float(eps), inv_n=1.0 / float(C * T)
    )
    cost = pl.CostEstimate(
        flops=6 * N * C * T,
        transcendentals=N,
        bytes_accessed=2 * N * C * T * itemsize + 2 * C * 4,
    )

    return pl.pallas_call(
        kernel,
        out_shape=jax.ShapeDtypeStruct((N, C, T), x.dtype),
        grid_spec=pltpu.PrefetchScalarGridSpec(
            num_scalar_prefetch=0,
            grid=(N,),
            in_specs=[
                # one full (C, T) sample per grid step, batch dim squeezed
                pl.BlockSpec((None, C, T), lambda b: (b, 0, 0)),
                pl.BlockSpec((C, 1), lambda b: (0, 0)),  # gamma, resident
                pl.BlockSpec((C, 1), lambda b: (0, 0)),  # beta, resident
            ],
            out_specs=pl.BlockSpec((None, C, T), lambda b: (b, 0, 0)),
        ),
        compiler_params=pltpu.CompilerParams(
            dimension_semantics=("parallel",),
            vmem_limit_bytes=vmem_limit,
        ),
        cost_estimate=cost,
    )(x, gamma, beta)


# -----------------------------------------------------------------------------
# T-tiled two-pass path for samples that do not fit VMEM.
# -----------------------------------------------------------------------------
def _gln_stats_kernel(x_ref, s1_ref, s2_ref):
    # x_ref: (C, tile_t);  s1_ref/s2_ref: (1, 1) f32 accumulators, resident
    # across the T-tile ("arbitrary") axis.  Re-initialized per batch element.
    @pl.when(pl.program_id(1) == 0)
    def _init():
        s1_ref[...] = jnp.zeros_like(s1_ref)
        s2_ref[...] = jnp.zeros_like(s2_ref)

    x = x_ref[...]
    s1_ref[...] += jnp.sum(x, dtype=jnp.float32)
    s2_ref[...] += jnp.sum(x * x, dtype=jnp.float32)


def _gln_norm_kernel(x_ref, scale_ref, shift_ref, o_ref):
    # Pure 2-op/element epilogue on a lane-dense (C, tile_t) slab.
    o_ref[...] = (x_ref[...] * scale_ref[...] + shift_ref[...]).astype(o_ref.dtype)


def _gln_tiled(x, gamma, beta, eps, tile_t):
    N, C, T = x.shape
    itemsize = jnp.dtype(x.dtype).itemsize
    n_t = T // tile_t
    vmem_limit = int(min(max(_tiled_vmem_estimate(C, tile_t, itemsize), 16 * _MIB), 96 * _MIB))

    # ---- pass 1: per-sample sum / sum-of-squares --------------------------
    stats_cost = pl.CostEstimate(
        flops=3 * N * C * T,
        transcendentals=0,
        bytes_accessed=N * C * T * itemsize + 2 * N * 4,
    )
    s1, s2 = pl.pallas_call(
        _gln_stats_kernel,
        out_shape=(
            jax.ShapeDtypeStruct((N, 1, 1), jnp.float32),
            jax.ShapeDtypeStruct((N, 1, 1), jnp.float32),
        ),
        grid_spec=pltpu.PrefetchScalarGridSpec(
            num_scalar_prefetch=0,
            grid=(N, n_t),
            in_specs=[pl.BlockSpec((None, C, tile_t), lambda b, t: (b, 0, t))],
            out_specs=(
                pl.BlockSpec((None, 1, 1), lambda b, t: (b, 0, 0)),
                pl.BlockSpec((None, 1, 1), lambda b, t: (b, 0, 0)),
            ),
        ),
        compiler_params=pltpu.CompilerParams(
            dimension_semantics=("parallel", "arbitrary"),
            vmem_limit_bytes=vmem_limit,
        ),
        cost_estimate=stats_cost,
    )(x)

    # ---- tiny O(N*C) scale/shift math outside the kernel -------------------
    inv_n = 1.0 / float(C * T)
    mean = s1 * inv_n                                    # (N, 1, 1)
    var = jnp.maximum(s2 * inv_n - mean * mean, 0.0)     # (N, 1, 1)
    inv_std = jax.lax.rsqrt(var + float(eps))
    scale = gamma[None].astype(jnp.float32) * inv_std    # (N, C, 1)
    shift = beta[None].astype(jnp.float32) - mean * scale

    # ---- pass 2: lane-dense normalize --------------------------------------
    norm_cost = pl.CostEstimate(
        flops=2 * N * C * T,
        transcendentals=0,
        bytes_accessed=2 * N * C * T * itemsize + 2 * N * C * 4,
    )
    return pl.pallas_call(
        _gln_norm_kernel,
        out_shape=jax.ShapeDtypeStruct((N, C, T), x.dtype),
        grid_spec=pltpu.PrefetchScalarGridSpec(
            num_scalar_prefetch=0,
            grid=(N, n_t),
            in_specs=[
                pl.BlockSpec((None, C, tile_t), lambda b, t: (b, 0, t)),
                pl.BlockSpec((None, C, 1), lambda b, t: (b, 0, 0)),   # scale
                pl.BlockSpec((None, C, 1), lambda b, t: (b, 0, 0)),   # shift
            ],
            out_specs=pl.BlockSpec((None, C, tile_t), lambda b, t: (b, 0, t)),
        ),
        compiler_params=pltpu.CompilerParams(
            dimension_semantics=("parallel", "parallel"),
            vmem_limit_bytes=vmem_limit,
        ),
        cost_estimate=norm_cost,
    )(x, scale, shift)


# -----------------------------------------------------------------------------
# Public wrapper (mirrors GlobalLayerNorm.forward).
# -----------------------------------------------------------------------------
def global_layer_norm(x, gamma, beta, eps=1e-5, *, tile_t=None):
    """Pallas implementation of GlobalLayerNorm.forward.

    x:     (N, C, T)
    gamma: (C, 1)
    beta:  (C, 1)
    tile_t: optional explicit T-tile width; forces the tiled two-pass path.
            Must equal T, or divide T and be a multiple of 128.
    """
    if x.ndim != 3:
        raise RuntimeError("GlobalLayerNorm requires a 3D tensor input")
    N, C, T = x.shape
    itemsize = jnp.dtype(x.dtype).itemsize

    if tile_t is None:
        # Prefer whole-sample residency when it fits the conservative budget
        # (single HBM read + write per element).
        if _whole_sample_vmem_estimate(C, T, itemsize) <= _WHOLE_SAMPLE_VMEM_BUDGET:
            return _gln_whole_sample(x, gamma, beta, eps)
        for cand in _TILE_CANDIDATES:
            if T % cand == 0 and _tiled_vmem_estimate(C, cand, itemsize) <= _TILE_VMEM_BUDGET:
                tile_t = cand
                break
        if tile_t is None:
            # No legal lane-aligned tile divides T: fall back to whole-sample
            # residency with a raised VMEM limit (fine on v5e/v6e).
            return _gln_whole_sample(x, gamma, beta, eps)
    else:
        if not (tile_t == T or (T % tile_t == 0 and tile_t % 128 == 0)):
            raise ValueError("tile_t must equal T, or divide T and be a multiple of 128")

    return _gln_tiled(x, gamma, beta, eps, tile_t)


def _reference(x, gamma, beta, eps=1e-5):
    mean = jnp.mean(x, axis=(1, 2), keepdims=True)
    var = jnp.mean((x - mean) ** 2, axis=(1, 2), keepdims=True)
    return gamma * (x - mean) / jnp.sqrt(var + eps) + beta


if __name__ == "__main__":
    # --- primary small case: whole-sample fused path -------------------------
    key = jax.random.PRNGKey(0)
    N, C, T = 2, 4, 16
    x = jax.random.normal(key, (N, C, T), dtype=jnp.float32)

    # Matches nn.Parameter(torch.zeros(C, 1)) / nn.Parameter(torch.ones(C, 1))
    beta = jnp.zeros((C, 1), dtype=jnp.float32)
    gamma = jnp.ones((C, 1), dtype=jnp.float32)

    out = jax.block_until_ready(global_layer_norm(x, gamma, beta, eps=1e-5))
    ref = _reference(x, gamma, beta, eps=1e-5)
    assert out.shape == (N, C, T)
    assert jnp.allclose(out, ref, atol=1e-5, rtol=1e-5), "whole-sample path mismatch"

    # --- small case exercising the T-tiled two-pass path ----------------------
    N2, C2, T2 = 2, 4, 256
    x2 = jax.random.normal(jax.random.PRNGKey(1), (N2, C2, T2), dtype=jnp.float32)
    gamma2 = 1.0 + 0.1 * jax.random.normal(jax.random.PRNGKey(2), (C2, 1), dtype=jnp.float32)
    beta2 = 0.1 * jax.random.normal(jax.random.PRNGKey(3), (C2, 1), dtype=jnp.float32)

    out2 = jax.block_until_ready(global_layer_norm(x2, gamma2, beta2, eps=1e-5, tile_t=128))
    ref2 = _reference(x2, gamma2, beta2, eps=1e-5)
    assert out2.shape == (N2, C2, T2)
    assert jnp.allclose(out2, ref2, atol=1e-5, rtol=1e-5), "tiled path mismatch"

    print("KERNEL_OK")
</pallas_src>

<mosaic_0001>
module attributes {stable_mosaic.version = 11 : i64} {
  func.func @_gln_fused_kernel(%arg0: i32, %arg1: memref<1x4x16xf32, #tpu.memory_space<vmem>>, %arg2: memref<4x1xf32, #tpu.memory_space<vmem>>, %arg3: memref<4x1xf32, #tpu.memory_space<vmem>>, %arg4: memref<1x4x16xf32, #tpu.memory_space<vmem>>) attributes {dimension_semantics = [#tpu.dimension_semantics<parallel>], iteration_bounds = array<i64: 2>, scalar_prefetch = 0 : i64, scratch_operands = 0 : i64, tpu.core_type = #tpu.core_type<tc>, window_params = [{transform_indices = @transform_0, window_bounds = array<i64: 1, 4, 16>}, {pipeline_mode = #tpu.pipeline_mode<synchronous>, transform_indices = @transform_1, window_bounds = array<i64: 4, 1>}, {pipeline_mode = #tpu.pipeline_mode<synchronous>, transform_indices = @transform_2, window_bounds = array<i64: 4, 1>}, {transform_indices = @transform_3, window_bounds = array<i64: 1, 4, 16>}]} {
    %c0 = arith.constant 0 : index
    %c0_0 = arith.constant 0 : index
    %c0_1 = arith.constant 0 : index
    %0 = vector.load %arg1[%c0, %c0_0, %c0_1] : memref<1x4x16xf32, #tpu.memory_space<vmem>>, vector<1x4x16xf32>
    %1 = vector.shape_cast %0 : vector<1x4x16xf32> to vector<4x16xf32>
    %2 = vector.shape_cast %1 : vector<4x16xf32> to vector<1x4x16xf32>
    %cst = arith.constant dense<0.000000e+00> : vector<1xf32>
    %3 = vector.multi_reduction <add>, %2, %cst [1, 2] : vector<1x4x16xf32> to vector<1xf32>
    %4 = vector.shape_cast %3 : vector<1xf32> to vector<1x1x1xf32>
    %5 = vector.extract %4[0, 0, 0] : f32 from vector<1x1x1xf32>
    %6 = arith.mulf %1, %1 : vector<4x16xf32>
    %7 = vector.shape_cast %6 : vector<4x16xf32> to vector<1x4x16xf32>
    %cst_2 = arith.constant dense<0.000000e+00> : vector<1xf32>
    %8 = vector.multi_reduction <add>, %7, %cst_2 [1, 2] : vector<1x4x16xf32> to vector<1xf32>
    %9 = vector.shape_cast %8 : vector<1xf32> to vector<1x1x1xf32>
    %10 = vector.extract %9[0, 0, 0] : f32 from vector<1x1x1xf32>
    %cst_3 = arith.constant 1.562500e-02 : f32
    %11 = arith.mulf %5, %cst_3 : f32
    %cst_4 = arith.constant 1.562500e-02 : f32
    %12 = arith.mulf %10, %cst_4 : f32
    %13 = arith.mulf %11, %11 : f32
    %14 = arith.subf %12, %13 : f32
    %cst_5 = arith.constant 0.000000e+00 : f32
    %15 = arith.maximumf %14, %cst_5 : f32
    %cst_6 = arith.constant 9.99999974E-6 : f32
    %16 = arith.addf %15, %cst_6 : f32
    %17 = math.rsqrt %16 : f32
    %c0_7 = arith.constant 0 : index
    %c0_8 = arith.constant 0 : index
    %18 = vector.load %arg2[%c0_7, %c0_8] : memref<4x1xf32, #tpu.memory_space<vmem>>, vector<4x1xf32>
    %19 = vector.broadcast %17 : f32 to vector<4x1xf32>
    %20 = arith.mulf %18, %19 : vector<4x1xf32>
    %c0_9 = arith.constant 0 : index
    %c0_10 = arith.constant 0 : index
    %21 = vector.load %arg3[%c0_9, %c0_10] : memref<4x1xf32, #tpu.memory_space<vmem>>, vector<4x1xf32>
    %22 = vector.broadcast %11 : f32 to vector<4x1xf32>
    %23 = arith.mulf %22, %20 : vector<4x1xf32>
    %24 = arith.subf %21, %23 : vector<4x1xf32>
    %25 = vector.broadcast %20 : vector<4x1xf32> to vector<4x16xf32>
    %26 = arith.mulf %1, %25 : vector<4x16xf32>
    %27 = vector.broadcast %24 : vector<4x1xf32> to vector<4x16xf32>
    %28 = arith.addf %26, %27 : vector<4x16xf32>
    %c0_11 = arith.constant 0 : index
    %c0_12 = arith.constant 0 : index
    %c0_13 = arith.constant 0 : index
    %29 = vector.load %arg4[%c0_11, %c0_12, %c0_13] : memref<1x4x16xf32, #tpu.memory_space<vmem>>, vector<1x4x16xf32>
    %30 = vector.shape_cast %29 : vector<1x4x16xf32> to vector<4x16xf32>
    %31 = vector.shape_cast %28 : vector<4x16xf32> to vector<1x4x16xf32>
    tpu.vector_store %arg4[%c0_11, %c0_12, %c0_13], %31 {strides = array<i32>} : memref<1x4x16xf32, #tpu.memory_space<vmem>>, vector<1x4x16xf32>,
    return
  }
  func.func @transform_0(%arg0: i32) -> (i32, i32, i32) {
    %c0_i32 = arith.constant 0 : i32
    %c0_i32_0 = arith.constant 0 : i32
    %c0_i32_1 = arith.constant 0 : i32
    return %arg0, %c0_i32, %c0_i32_0 : i32, i32, i32
  }
  func.func @transform_1(%arg0: i32) -> (i32, i32) {
    %c0_i32 = arith.constant 0 : i32
    %c0_i32_0 = arith.constant 0 : i32
    %c0_i32_1 = arith.constant 0 : i32
    return %c0_i32, %c0_i32_0 : i32, i32
  }
  func.func @transform_2(%arg0: i32) -> (i32, i32) {
    %c0_i32 = arith.constant 0 : i32
    %c0_i32_0 = arith.constant 0 : i32
    %c0_i32_1 = arith.constant 0 : i32
    return %c0_i32, %c0_i32_0 : i32, i32
  }
  func.func @transform_3(%arg0: i32) -> (i32, i32, i32) {
    %c0_i32 = arith.constant 0 : i32
    %c0_i32_0 = arith.constant 0 : i32
    %c0_i32_1 = arith.constant 0 : i32
    return %arg0, %c0_i32, %c0_i32_0 : i32, i32, i32
  }
}

</mosaic_0001>

<llo_original>
// kernel: tpu_custom_call.1
$region0: #{tpu_custom_call.1}
  #allocation0 [shape = 'u32[]', space=smem, size = 0x4, offset = 0x4, fixed_abs, tag = 'smem constant byte address 0x4 - core index']
  #allocation1 [shape = 'u32[144,128]{1,0:T(1,128)}', space=vmem, size = 0x12000, scoped, tag = 'internal scratch']
  %s0 = inlined_call_operand.vmem [shape: f32[2,4,16], index: 0, kind: input, shape index: {}]
  %s1 = inlined_call_operand.vmem [shape: f32[4,1], index: 1, kind: input, shape index: {}]
  %s2 = inlined_call_operand.vmem [shape: f32[4,1], index: 2, kind: input, shape index: {}]
  %s3 = inlined_call_operand.hbm [shape: f32[2,4,16], index: 3, kind: output, shape index: {}]
  %s4 = sld [smem:[#allocation0]]
  $region45: #{tpu_custom_call.1} parent=0
    _
  %s6 = ssub.s32 1, %s4
  %s7 = scalar_select 0, %s6, %s4
  $region1: #{tpu_custom_call.1} parent=0
    #allocation2 [shape = 'u8[4096]{0}', space=vmem, size = 0x1000, scoped, tag = 'output window, operand 0']
    #allocation3 [shape = 's32[2]{0}', space=sflag, size = 0x8, scoped, tag = 'scoped memory for tpu_custom_call.1']
    %8 = vsyncpa [#allocation3], 0
    %s9 = scalar_lea.sflag [#allocation3], 1
    %10 = vsyncpa %s9, 0
    loop: start=0, step=1, limit=4
    $region2: #{tpu_custom_call.1} parent=1 // loop_pre_header
      _
    $region3: #{tpu_custom_call.1} parent=1 // loop_header
      %s12 = sphi 0, %s16
      %p13 = scmp.ge.s32.totalorder %s12, 4
      %s22 = sphi 0, %s24
      %s25 = sphi 0, %s22
      %s26 = sphi 0, %s25
      %s42 = sphi 0, %s26
      %s46 = sphi 0, %s46
      %s48 = sphi 0, %s46
      %s49 = sphi 0, %s48
      %s63 = sphi 0, %s49
      %s67 = sphi 0, %s67
      %s69 = sphi 0, %s67
      %s70 = sphi 0, %s69
      %s84 = sphi 0, %s70
      %s90 = sphi 0, %s92
      %s93 = sphi 0, %s90
      %s94 = sphi 0, %s93
      %s110 = sphi 0, %s94
    $region4: #{tpu_custom_call.1} parent=1 // loop_header_branch
      %15 = sbr.rel (%p13) target = $region8
    $region5: #{tpu_custom_call.1} parent=1 // loop_body
      %s17 = ssub.s32 %s12, 1
      %s18 = ssub.s32 %s12, 2
      %s19 = sadd.s32 %s12, 1
      %s20 = ssub.s32 %s12, %s19
      %p21 = scmp.eq.s32.totalorder %s20, 0
      %s23 = sadd.s32 %s22, 1
      %s24 = scalar_select %p21, %s22, %s23
      %p27 = pneg %p21
      %p28 = scmp.eq.s32.totalorder %s12, 1
      %p29 = por %p27, %p28
      %p30 = scmp.ne.s32.totalorder %s22, %s25
      %p31 = scmp.eq.s32.totalorder %s12, 0
      %p32 = por %p30, %p31
      %p33 = scmp.ne.s32.totalorder %s22, %s25
      %p34 = scmp.eq.s32.totalorder %s17, 1
      %p35 = por %p33, %p34
      %p36 = scmp.ne.s32.totalorder %s25, %s26
      %p37 = scmp.eq.s32.totalorder %s17, 0
      %p38 = por %p36, %p37
      %p39 = scmp.ne.s32.totalorder %s25, %s26
      %p40 = scmp.eq.s32.totalorder %s18, 1
      %p41 = por %p39, %p40
      %p43 = scmp.ne.s32.totalorder %s26, %s42
      %p44 = scmp.eq.s32.totalorder %s18, 0
      %p45 = por %p43, %p44
      %s47 = sadd.s32 %s46, 1
      %p50 = scmp.eq.s32.totalorder %s12, 1
      %p51 = scmp.ne.s32.totalorder %s46, %s48
      %p52 = scmp.eq.s32.totalorder %s12, 0
      %p53 = por %p51, %p52
      %p54 = scmp.ne.s32.totalorder %s46, %s48
      %p55 = scmp.eq.s32.totalorder %s17, 1
      %p56 = por %p54, %p55
      %p57 = scmp.ne.s32.totalorder %s48, %s49
      %p58 = scmp.eq.s32.totalorder %s17, 0
      %p59 = por %p57, %p58
      %p60 = scmp.ne.s32.totalorder %s48, %s49
      %p61 = scmp.eq.s32.totalorder %s18, 1
      %p62 = por %p60, %p61
      %p64 = scmp.ne.s32.totalorder %s49, %s63
      %p65 = scmp.eq.s32.totalorder %s18, 0
      %p66 = por %p64, %p65
      %s68 = sadd.s32 %s67, 1
      %p71 = scmp.eq.s32.totalorder %s12, 1
      %p72 = scmp.ne.s32.totalorder %s67, %s69
      %p73 = scmp.eq.s32.totalorder %s12, 0
      %p74 = por %p72, %p73
      %p75 = scmp.ne.s32.totalorder %s67, %s69
      %p76 = scmp.eq.s32.totalorder %s17, 1
      %p77 = por %p75, %p76
      %p78 = scmp.ne.s32.totalorder %s69, %s70
      %p79 = scmp.eq.s32.totalorder %s17, 0
      %p80 = por %p78, %p79
      %p81 = scmp.ne.s32.totalorder %s69, %s70
      %p82 = scmp.eq.s32.totalorder %s18, 1
      %p83 = por %p81, %p82
      %p85 = scmp.ne.s32.totalorder %s70, %s84
      %p86 = scmp.eq.s32.totalorder %s18, 0
      %p87 = por %p85, %p86
      %s88 = ssub.s32 %s12, %s19
      %p89 = scmp.eq.s32.totalorder %s88, 0
      %s91 = sadd.s32 %s90, 1
      %s92 = scalar_select %p89, %s90, %s91
      %p95 = pneg %p89
      %p96 = scmp.eq.s32.totalorder %s12, 1
      %p97 = por %p95, %p96
      %p98 = scmp.ne.s32.totalorder %s90, %s93
      %p99 = scmp.eq.s32.totalorder %s12, 0
      %p100 = por %p98, %p99
      %p101 = scmp.ne.s32.totalorder %s90, %s93
      %p102 = scmp.eq.s32.totalorder %s17, 1
      %p103 = por %p101, %p102
      %p104 = scmp.ne.s32.totalorder %s93, %s94
      %p105 = scmp.eq.s32.totalorder %s17, 0
      %p106 = por %p104, %p105
      %p107 = scmp.ne.s32.totalorder %s93, %s94
      %p108 = scmp.eq.s32.totalorder %s18, 1
      %p109 = por %p107, %p108
      %p111 = scmp.ne.s32.totalorder %s94, %s110
      %p112 = scmp.eq.s32.totalorder %s18, 0
      %p113 = por %p111, %p112
      %p114 = scmp.le.s32.totalorder 1, %s12
      %p115 = scmp.lt.s32.totalorder %s12, 3
      %p116 = pnand %p114, %p115
      %p117 = pneg %p116
      // Predicated region
      $region9: #{tpu_custom_call.1} parent=5 // pred_check
        _
      $region10: #{tpu_custom_call.1} parent=5 // pred_check_branch
        %119 = sbr.rel (%p116) target = $region12
      $region11: #{tpu_custom_call.1} parent=5 // pred_region
        %s120 = ssub.s32 %s12, 1
        // Predicated region
        $region13: #{tpu_custom_call.1} parent=11 // pred_check
          %p121 = pneg %p59
        $region14: #{tpu_custom_call.1} parent=11 // pred_check_branch
          %123 = sbr.rel (%p121) target = $region16
        $region15: #{tpu_custom_call.1} parent=11 // pred_region
          _
        $region16: #{tpu_custom_call.1} parent=11 // pred_fallthru
          _
        // Predicated region
        $region17: #{tpu_custom_call.1} parent=11 // pred_check
          %p124 = pneg %p80
        $region18: #{tpu_custom_call.1} parent=11 // pred_check_branch
          %126 = sbr.rel (%p124) target = $region20
        $region19: #{tpu_custom_call.1} parent=11 // pred_region
          _
        $region20: #{tpu_custom_call.1} parent=11 // pred_fallthru
          _
      $region12: #{tpu_custom_call.1} parent=5 // pred_fallthru
        _
      %p127 = scmp.lt.s32.totalorder %s12, 2
      // Predicated region
      $region21: #{tpu_custom_call.1} parent=5 // pred_check
        %p128 = pneg %p127
      $region22: #{tpu_custom_call.1} parent=5 // pred_check_branch
        %130 = sbr.rel (%p128) target = $region24
      $region23: #{tpu_custom_call.1} parent=5 // pred_region
        // Predicated region
        $region25: #{tpu_custom_call.1} parent=23 // pred_check
          %p131 = pneg %p32
        $region26: #{tpu_custom_call.1} parent=23 // pred_check_branch
          %133 = sbr.rel (%p131) target = $region28
        $region27: #{tpu_custom_call.1} parent=23 // pred_region
          %p134 = scmp.lt.s32.totalorder %s12, 1
          %s135 = scalar_select %p134, %s12, 1
          %s136 = smul.addr %s135, 4
          %s137 = scalar_lea.vmem %s0, %s136
        $region28: #{tpu_custom_call.1} parent=23 // pred_fallthru
          _
      $region24: #{tpu_custom_call.1} parent=5 // pred_fallthru
        _
      %p138 = scmp.le.s32.totalorder 1, %s12
      %p139 = scmp.lt.s32.totalorder %s12, 3
      %p140 = pnand %p138, %p139
      %p141 = pneg %p140
      // Predicated region
      $region29: #{tpu_custom_call.1} parent=5 // pred_check
        _
      $region30: #{tpu_custom_call.1} parent=5 // pred_check_branch
        %143 = sbr.rel (%p140) target = $region32
      $region31: #{tpu_custom_call.1} parent=5 // pred_region
        %s144 = ssub.s32 %s12, 1
        %p145 = scmp.lt.s32.totalorder %s17, 1
        %s146 = scalar_select %p145, %s17, 1
        %s147 = smul.addr %s146, 4
        %s148 = scalar_lea.vmem %s0, %s147
        %p149 = pneg %p38
        %p150 = pneg %p35
        %p151 = pneg %p59
        %p152 = pneg %p56
        %p153 = pneg %p80
        %p154 = pneg %p77
        %p155 = pneg %p106
        %p156 = pneg %p103
        %s157 = sand.u32 %s93, 1
        %s158 = scalar_lea.sflag [#allocation3], %s157
        %s159 = sand.u32 %s93, 1
        %s160 = smul.addr %s159, 4
        %s161 = scalar_lea.vmem [#allocation2], %s160
        %p162 = scmp.lt.s32.totalorder %s17, 1
        %s163 = scalar_select %p162, %s17, 1
        %s164 = smul.addr %s163, 4
        %s165 = scalar_lea.vmem %s0, %s164
        %v166 = vld [vmem:[%s165] sm:$0xf]
        %vm167 = vcmask 125952
        %v168 = vsel %vm167, %v166, 0.0
        %169 = vadd.xlane.f32.xlu0 %v168
        %v170 = vpop.xlane.xlu0 %169
        %v171 = vrot.slane %v170, 4
        %v172 = vadd.f32 %v170, %v171
        %v173 = vrot.slane %v172, 2
        %v174 = vadd.f32 %v172, %v173
        %v175 = vrot.slane %v174, 1
        %v176 = vadd.f32 %v174, %v175
        %s177 = vtos %v176
        %v178 = vmul.f32 %v166, %v166
        %v179 = vsel %vm167, %v178, 0.0
        %180 = vadd.xlane.f32.xlu0 %v179
        %v181 = vpop.xlane.xlu0 %180
        %v182 = vrot.slane %v181, 4
        %v183 = vadd.f32 %v181, %v182
        %v184 = vrot.slane %v183, 2
        %v185 = vadd.f32 %v183, %v184
        %v186 = vrot.slane %v185, 1
        %v187 = vadd.f32 %v185, %v186
        %s188 = vtos %v187
        %s189 = smul.f32 %s177, 0.015625
        %s190 = smul.f32 %s188, 0.015625
        %s191 = smul.f32 %s189, %s189
        %s192 = ssub.f32 %s190, %s191
        %s193 = smax.f32 %s192, 0.0
        %s194 = sadd.f32 %s193, 1e-05
        %v195 = vstv %s194
        %v196 = vrsqrt.pop %v195
        %s197 = vtos %v196
        %v198 = vld [vmem:[%s1] sm:$0xf]
        %v199 = vstv %s197
        %v200 = vmul.f32 %v198, %v199
        %v201 = vld [vmem:[%s2] sm:$0xf]
        %v202 = vstv %s189
        %v203 = vmul.f32 %v202, %v200
        %v204 = vsub.f32 %v201, %v203
        %206 = vset.pattern.permute.xlu0 0
        %207 = vperm.xlu0 %206, %v200
        %v208 = vpop.permute.xlu0 %207
        %v210 = vmul.f32 %v166, %v208
        %212 = vset.pattern.permute.xlu0 0
        %213 = vperm.xlu0 %212, %v204
        %v214 = vpop.permute.xlu0 %213
        %v216 = vadd.f32 %v210, %v214
        %217 = vst.msk [vmem:[%s161] sm:$0xf] %vm167, %v216
        %s218 = sand.u32 %s93, 1
        %s219 = scalar_lea.sflag [#allocation3], %s218
        %s220 = sand.u32 %s93, 1
        %s221 = smul.addr %s220, 4
        %s222 = scalar_lea.vmem [#allocation2], %s221
        // Predicated region
        $region33: #{tpu_custom_call.1} parent=31 // pred_check
          %p223 = pneg %p103
        $region34: #{tpu_custom_call.1} parent=31 // pred_check_branch
          %225 = sbr.rel (%p223) target = $region36
        $region35: #{tpu_custom_call.1} parent=31 // pred_region
          %s227 = ssub.s32 64, 64
          %228 = vsyncadd %s219, %s227
          %s229 = smul.addr %s17, 64
          %s230 = scalar_lea.hbm %s3, %s229
          %s232 = sshll.u32 %s222, 4
          %s233 = int_to_ptr.vmem [resolvable:$true] %s232
          %235 = dma.vmem_to_hbm [thread:$0]  %s233, 64, %s230, %s219
        $region36: #{tpu_custom_call.1} parent=31 // pred_fallthru
          _
      $region32: #{tpu_custom_call.1} parent=5 // pred_fallthru
        _
      %p236 = scmp.le.s32.totalorder 2, %s12
      // Predicated region
      $region37: #{tpu_custom_call.1} parent=5 // pred_check
        %p237 = pneg %p236
      $region38: #{tpu_custom_call.1} parent=5 // pred_check_branch
        %239 = sbr.rel (%p237) target = $region40
      $region39: #{tpu_custom_call.1} parent=5 // pred_region
        %s240 = ssub.s32 %s12, 2
        // Predicated region
        $region41: #{tpu_custom_call.1} parent=39 // pred_check
          %p241 = pneg %p109
        $region42: #{tpu_custom_call.1} parent=39 // pred_check_branch
          %243 = sbr.rel (%p241) target = $region44
        $region43: #{tpu_custom_call.1} parent=39 // pred_region
          %s244 = sand.u32 %s94, 1
          %s245 = scalar_lea.sflag [#allocation3], %s244
          %s246 = sand.u32 %s94, 1
          %s247 = smul.addr %s246, 4
          %s248 = scalar_lea.vmem [#allocation2], %s247
          %249 = dma.done %s245, 64
        $region44: #{tpu_custom_call.1} parent=39 // pred_fallthru
          _
      $region40: #{tpu_custom_call.1} parent=5 // pred_fallthru
        _
    $region6: #{tpu_custom_call.1} parent=1 // loop_footer
      %s16 = sadd.s32 1, %s12
    $region7: #{tpu_custom_call.1} parent=1 // loop_footer_branch
      %11 = sbr.rel target = $region3
    $region8: #{tpu_custom_call.1} parent=1 // loop_exit
      _
    %250 = vsyncpa [#allocation3], 1
    %s251 = scalar_lea.sflag [#allocation3], 1
    %252 = vsyncpa %s251, 1

</llo_original>
